<compile_context>
chip_gen: v7x
topology: tpu7x:2x2x1
jax: 0.10.0
libtpu: 0.0.40
codegen_flags: <defaults>
</compile_context>

<pallas_src>
import functools

import jax
import jax.numpy as jnp
from jax.experimental import pallas as pl
from jax.experimental.pallas import tpu as pltpu

LN_EPS = 1e-5


def _round_up(a, b):
    return -(-a // b) * b


def _vmem_capacity_bytes():
    """Per-generation VMEM capacity (v5e/v6e: 128 MiB, v7x: 64 MiB per core)."""
    try:
        cap = int(pltpu.get_tpu_info().vmem_capacity_bytes)
        if cap > 0:
            return cap
    except Exception:
        pass
    return 64 << 20  # conservative (v7x-sized) fallback


def _footprint_bytes(bm, bn, D, w_bufs, x_isz, out_isz, c_isz):
    """Estimated VMEM bytes for one tiling choice (incl. untracked f32 LN temps)."""
    resid = 2 * bm * bn * x_isz if bn < D else 0      # residual slab only when column-tiled
    return (2 * bm * D * x_isz                        # full-width x rows, double-buffered
            + resid
            + 2 * bm * bn * out_isz                   # output slab, double-buffered
            + w_bufs * D * bn * c_isz                 # W^T slab(s)
            + 2 * 8 * bn * 4                          # bias slab (sublane-padded)
            + 2 * 2 * 8 * D * 4                       # gamma / beta
            + bm * D * c_isz                          # xn scratch
            + 3 * bm * D * 4)                         # f32 LayerNorm temporaries


def _tile_plan(M, D, x_isz, out_isz, c_isz, vmem_cap, tm=None, bn=None):
    """Choose (bm, bn, w_bufs, row_align) from problem size + per-chip VMEM budget.

    Policy:
      * prefer keeping the whole (D, D) weight resident and single-buffered;
      * otherwise column-tile the weight and maximise bm first (roofline on the
        re-streamed weight), then bn;
      * keep >= 2 row tiles in the resident case so both v7x TensorCores get work;
      * align row tiles to the packing of the narrowest participating dtype.
    """
    budget = int(vmem_cap * 0.70)                     # headroom for Mosaic internals

    min_isz = min(x_isz, out_isz, c_isz)
    row_align = 8 if min_isz >= 4 else (16 if min_isz == 2 else 32)
    m_pad = _round_up(max(M, 1), row_align)

    def fits(bm_, bn_, bufs_):
        return _footprint_bytes(bm_, bn_, D, bufs_, x_isz, out_isz, c_isz) <= budget

    bm_cands = sorted({c for c in (1024, 768, 512, 384, 256, 128, 64, 32, 16, 8)
                       if c % row_align == 0 and c <= m_pad} | {m_pad}, reverse=True)

    # ---- weight column slab ----
    if bn is not None and bn != D and D % bn != 0:
        bn = None
    if bn is None:
        if fits(min(256, m_pad), D, 1):
            bn = D                                    # whole weight resident
        else:
            bn_cands = [c for c in (2048, 1024, 512, 256, 128) if c < D and D % c == 0]
            if not bn_cands:
                bn = D                                # odd D: full-width slabs (may spill)
            else:
                bn = min(bn_cands)
                done = False
                for bm_c in bm_cands:                 # bm first: roofline on re-streamed W
                    for bn_c in bn_cands:
                        if fits(bm_c, bn_c, 2):
                            bn = bn_c
                            done = True
                            break
                    if done:
                        break
    w_bufs = 1 if bn == D else 2                      # constant block index -> single buffer

    # ---- row tile ----
    if tm is not None:
        bm = min(_round_up(max(tm, 1), row_align), m_pad)
    else:
        cap = m_pad
        if bn == D and M >= 2 * row_align:
            # Megacore (v7x): >= 2 row tiles costs nothing extra when W is resident.
            cap = min(cap, _round_up(-(-M // 2), row_align))
        bm = row_align
        for c in bm_cands:
            if c <= cap and fits(c, bn, w_bufs):
                bm = c
                break
    return bm, bn, w_bufs, row_align


def prenorm_add_kernel(*refs, residual_is_slab):
    # Ref layout (residual_is_slab=True, i.e. the weight is column-tiled):
    #   x_ref     (bm, D)   full-width input rows (LayerNorm input; fetched once per i)
    #   xres_ref  (bm, bn)  statically-blocked residual slab of the same input
    #   gamma_ref (1, D), beta_ref (1, D)
    #   w_ref     (D, bn)   column slab of W^T (y = xn @ W^T)
    #   b_ref     (1, bn)   column slab of the Linear bias
    #   o_ref     (bm, bn)  output slab
    #   xn_ref    (bm, D)   scratch: normalized rows in the MXU compute dtype
    # When residual_is_slab=False (bn == D) the xres input is dropped and the
    # full-width x block doubles as the residual (x is never streamed twice).
    if residual_is_slab:
        x_ref, xres_ref, gamma_ref, beta_ref, w_ref, b_ref, o_ref, xn_ref = refs
    else:
        x_ref, gamma_ref, beta_ref, w_ref, b_ref, o_ref, xn_ref = refs
        xres_ref = x_ref

    j = pl.program_id(1)

    # --- LayerNorm once per row tile (two-pass mean/variance for stability) ---
    @pl.when(j == 0)
    def _():
        x = x_ref[...].astype(jnp.float32)
        mean = jnp.mean(x, axis=-1, keepdims=True)
        xc = x - mean
        var = jnp.mean(xc * xc, axis=-1, keepdims=True)
        inv = jax.lax.rsqrt(var + LN_EPS)
        xn = (xc * inv) * gamma_ref[...].astype(jnp.float32) \
             + beta_ref[...].astype(jnp.float32)
        xn_ref[...] = xn.astype(xn_ref.dtype)

    # --- Sublayer (nn.Linear slab): MXU operands in compute dtype, f32 accumulate ---
    y = jnp.dot(xn_ref[...], w_ref[...], preferred_element_type=jnp.float32)
    y = y + b_ref[...].astype(jnp.float32)

    # --- Residual add against the matching (statically blocked) input slab ---
    o_ref[...] = (xres_ref[...].astype(jnp.float32) + y).astype(o_ref.dtype)


def prenorm_and_add(x, gamma, beta, w, b, *, compute_dtype=None, tm=None, bn=None):
    """PreNormAndAdd forward: X + Linear(LayerNorm(X)).

    x: [B, S, D]; gamma/beta/b: [D]; w: [D, D] (PyTorch nn.Linear layout, y = x @ W^T + b).
    compute_dtype: MXU operand dtype for the Linear; default = w.dtype (preserves the
      module's numerics).  Pass jnp.bfloat16 for f32-stored weights to use the fast
      bf16 MXU path (and halve the weight DMA bytes) when precision allows.
    tm / bn: optional row-tile / weight-column-tile overrides (tuning/testing hooks).
    """
    B, S, D = x.shape
    M = B * S

    if compute_dtype is None:
        compute_dtype = w.dtype
    compute_dtype = jnp.dtype(compute_dtype)

    x2 = x.reshape(M, D)
    gamma2 = gamma.reshape(1, D)
    beta2 = beta.reshape(1, D)
    wt = w.T.astype(compute_dtype)            # kernel computes xn @ W^T in compute_dtype
    b2 = b.reshape(1, D)

    vmem_cap = _vmem_capacity_bytes()
    bm, bn_sel, w_bufs, _ = _tile_plan(
        M, D, x2.dtype.itemsize, x.dtype.itemsize, compute_dtype.itemsize,
        vmem_cap, tm=tm, bn=bn)

    Mp = _round_up(M, bm)
    if Mp != M:
        # Zero rows are harmless (LN of zeros is finite); sliced off after the call.
        x2 = jnp.pad(x2, ((0, Mp - M), (0, 0)))

    grid = (Mp // bm, D // bn_sel)
    residual_is_slab = bn_sel < D

    in_specs = [pl.BlockSpec((bm, D), lambda i, j: (i, 0))]              # x rows (LN input)
    args = [x2]
    if residual_is_slab:
        in_specs.append(pl.BlockSpec((bm, bn_sel), lambda i, j: (i, j)))  # residual slab
        args.append(x2)
    in_specs += [
        pl.BlockSpec((1, D), lambda i, j: (0, 0)),                        # gamma
        pl.BlockSpec((1, D), lambda i, j: (0, 0)),                        # beta
        # Weight slab: single-buffered when fully resident (constant block index),
        # double-buffered when column-tiled and re-streamed per row tile.
        pl.BlockSpec((D, bn_sel), lambda i, j: (0, j),
                     pipeline_mode=pl.Buffered(w_bufs)),
        pl.BlockSpec((1, bn_sel), lambda i, j: (0, j)),                   # bias slab
    ]
    args += [gamma2, beta2, wt, b2]

    est = _footprint_bytes(bm, bn_sel, D, w_bufs, x2.dtype.itemsize,
                           x.dtype.itemsize, compute_dtype.itemsize)
    vmem_limit = int(min(max(int(est * 1.15) + (2 << 20), 32 << 20),
                         max(vmem_cap - (1 << 20), 16 << 20)))

    out = pl.pallas_call(
        functools.partial(prenorm_add_kernel, residual_is_slab=residual_is_slab),
        out_shape=jax.ShapeDtypeStruct((Mp, D), x.dtype),
        grid_spec=pltpu.PrefetchScalarGridSpec(
            num_scalar_prefetch=0,
            grid=grid,
            in_specs=in_specs,
            out_specs=pl.BlockSpec((bm, bn_sel), lambda i, j: (i, j)),
            scratch_shapes=[pltpu.VMEM((bm, D), compute_dtype)],
        ),
        compiler_params=pltpu.CompilerParams(
            dimension_semantics=("parallel", "arbitrary"),
            vmem_limit_bytes=vmem_limit,
        ),
    )(*args)

    return out[:M].reshape(B, S, D)


def _reference(x, gamma, beta, w, b):
    xf = x.astype(jnp.float32)
    mean = jnp.mean(xf, axis=-1, keepdims=True)
    var = jnp.mean((xf - mean) ** 2, axis=-1, keepdims=True)
    xn = (xf - mean) / jnp.sqrt(var + LN_EPS) * gamma.astype(jnp.float32) \
         + beta.astype(jnp.float32)
    y = xn @ w.T.astype(jnp.float32) + b.astype(jnp.float32)
    return (xf + y).astype(x.dtype)


if __name__ == "__main__":
    # Canonical small transformer shape: batch=2, seq=8, d_model=32.
    B, S, D = 2, 8, 32
    key = jax.random.PRNGKey(0)
    kx, kw, kb = jax.random.split(key, 3)

    x = jax.random.normal(kx, (B, S, D), dtype=jnp.float32)
    gamma = jnp.ones((D,), dtype=jnp.float32)     # PyTorch LayerNorm default init
    beta = jnp.zeros((D,), dtype=jnp.float32)
    w = jax.random.normal(kw, (D, D), dtype=jnp.float32) * (1.0 / jnp.sqrt(D))
    b = jax.random.normal(kb, (D,), dtype=jnp.float32) * 0.01

    out = jax.block_until_ready(prenorm_and_add(x, gamma, beta, w, b))
    ref = _reference(x, gamma, beta, w, b)
    assert out.shape == (B, S, D)
    assert jnp.allclose(out, ref, atol=1e-4, rtol=1e-4), "mismatch vs reference (f32)"

    # Padded-tail / multi-row-tile path (M=24 not divisible by bm=16).
    x3 = jax.random.normal(kx, (2, 12, D), dtype=jnp.float32)
    out3 = jax.block_until_ready(prenorm_and_add(x3, gamma, beta, w, b, tm=16))
    assert jnp.allclose(out3, _reference(x3, gamma, beta, w, b), atol=1e-4, rtol=1e-4), \
        "mismatch vs reference (padded tail)"

    # Column-tiled weight path (bn < D): 2x2 grid, xn scratch reused across j.
    D2 = 256
    kx2, kw2, kb2 = jax.random.split(jax.random.PRNGKey(1), 3)
    x4 = jax.random.normal(kx2, (2, 8, D2), dtype=jnp.float32)
    g4 = jnp.ones((D2,), jnp.float32)
    be4 = jnp.zeros((D2,), jnp.float32)
    w4 = jax.random.normal(kw2, (D2, D2), jnp.float32) * (1.0 / jnp.sqrt(D2))
    b4 = jax.random.normal(kb2, (D2,), jnp.float32) * 0.01
    out4 = jax.block_until_ready(prenorm_and_add(x4, g4, be4, w4, b4, tm=8, bn=128))
    assert jnp.allclose(out4, _reference(x4, g4, be4, w4, b4), atol=1e-3, rtol=1e-3), \
        "mismatch vs reference (column-tiled weight)"

    # bf16 activations + bf16 weights: resident, single-buffered weight, bf16 MXU path.
    D3 = 128
    kx3, kw3, kb3 = jax.random.split(jax.random.PRNGKey(2), 3)
    x5 = jax.random.normal(kx3, (2, 8, D3), dtype=jnp.float32).astype(jnp.bfloat16)
    g5 = jnp.ones((D3,), jnp.float32)
    be5 = jnp.zeros((D3,), jnp.float32)
    w5 = (jax.random.normal(kw3, (D3, D3), jnp.float32) * (1.0 / jnp.sqrt(D3))
          ).astype(jnp.bfloat16)
    b5 = (jax.random.normal(kb3, (D3,), jnp.float32) * 0.01).astype(jnp.bfloat16)
    out5 = jax.block_until_ready(prenorm_and_add(x5, g5, be5, w5, b5))
    ref5 = _reference(x5, g5, be5, w5, b5)
    assert jnp.allclose(out5.astype(jnp.float32), ref5.astype(jnp.float32),
                        atol=5e-2, rtol=5e-2), "mismatch vs reference (bf16)"

    print("KERNEL_OK")
</pallas_src>

<mosaic_0001>
module attributes {stable_mosaic.version = 11 : i64} {
  func.func @prenorm_add_kernel(%arg0: i32, %arg1: i32, %arg2: memref<8x32xf32, #tpu.memory_space<vmem>>, %arg3: memref<1x32xf32, #tpu.memory_space<vmem>>, %arg4: memref<1x32xf32, #tpu.memory_space<vmem>>, %arg5: memref<32x32xf32, #tpu.memory_space<vmem>>, %arg6: memref<1x32xf32, #tpu.memory_space<vmem>>, %arg7: memref<8x32xf32, #tpu.memory_space<vmem>>, %arg8: memref<8x32xf32, #tpu.memory_space<vmem>>) attributes {dimension_semantics = [#tpu.dimension_semantics<parallel>, #tpu.dimension_semantics<arbitrary>], iteration_bounds = array<i64: 2, 1>, scalar_prefetch = 0 : i64, scratch_operands = 1 : i64, tpu.core_type = #tpu.core_type<tc>, window_params = [{transform_indices = @transform_0, window_bounds = array<i64: 8, 32>}, {pipeline_mode = #tpu.pipeline_mode<synchronous>, transform_indices = @transform_1, window_bounds = array<i64: 1, 32>}, {pipeline_mode = #tpu.pipeline_mode<synchronous>, transform_indices = @transform_2, window_bounds = array<i64: 1, 32>}, {pipeline_mode = #tpu.pipeline_mode<synchronous>, transform_indices = @transform_3, window_bounds = array<i64: 32, 32>}, {transform_indices = @transform_4, window_bounds = array<i64: 1, 32>}, {transform_indices = @transform_5, window_bounds = array<i64: 8, 32>}]} {
    %c0_i32 = arith.constant 0 : i32
    %0 = arith.cmpi eq, %arg1, %c0_i32 : i32
    %1 = arith.extui %0 : i1 to i32
    %c0_i32_0 = arith.constant 0 : i32
    %2 = arith.cmpi ne, %1, %c0_i32_0 : i32
    scf.if %2 {
      %c0_10 = arith.constant 0 : index
      %c0_11 = arith.constant 0 : index
      %12 = vector.load %arg2[%c0_10, %c0_11] : memref<8x32xf32, #tpu.memory_space<vmem>>, vector<8x32xf32>
      %cst_12 = arith.constant dense<0.000000e+00> : vector<8xf32>
      %13 = vector.multi_reduction <add>, %12, %cst_12 [1] : vector<8x32xf32> to vector<8xf32>
      %14 = vector.shape_cast %13 : vector<8xf32> to vector<8x1xf32>
      %cst_13 = arith.constant 3.200000e+01 : f32
      %15 = vector.broadcast %cst_13 : f32 to vector<8x1xf32>
      %16 = arith.divf %14, %15 : vector<8x1xf32>
      %17 = vector.broadcast %16 : vector<8x1xf32> to vector<8x32xf32>
      %18 = arith.subf %12, %17 : vector<8x32xf32>
      %19 = arith.mulf %18, %18 : vector<8x32xf32>
      %cst_14 = arith.constant dense<0.000000e+00> : vector<8xf32>
      %20 = vector.multi_reduction <add>, %19, %cst_14 [1] : vector<8x32xf32> to vector<8xf32>
      %21 = vector.shape_cast %20 : vector<8xf32> to vector<8x1xf32>
      %cst_15 = arith.constant 3.200000e+01 : f32
      %22 = vector.broadcast %cst_15 : f32 to vector<8x1xf32>
      %23 = arith.divf %21, %22 : vector<8x1xf32>
      %cst_16 = arith.constant 9.99999974E-6 : f32
      %24 = vector.broadcast %cst_16 : f32 to vector<8x1xf32>
      %25 = arith.addf %23, %24 : vector<8x1xf32>
      %26 = math.rsqrt %25 : vector<8x1xf32>
      %27 = vector.broadcast %26 : vector<8x1xf32> to vector<8x32xf32>
      %28 = arith.mulf %18, %27 : vector<8x32xf32>
      %c0_17 = arith.constant 0 : index
      %c0_18 = arith.constant 0 : index
      %29 = vector.load %arg3[%c0_17, %c0_18] : memref<1x32xf32, #tpu.memory_space<vmem>>, vector<1x32xf32>
      %30 = vector.broadcast %29 : vector<1x32xf32> to vector<8x32xf32>
      %31 = arith.mulf %28, %30 : vector<8x32xf32>
      %c0_19 = arith.constant 0 : index
      %c0_20 = arith.constant 0 : index
      %32 = vector.load %arg4[%c0_19, %c0_20] : memref<1x32xf32, #tpu.memory_space<vmem>>, vector<1x32xf32>
      %33 = vector.broadcast %32 : vector<1x32xf32> to vector<8x32xf32>
      %34 = arith.addf %31, %33 : vector<8x32xf32>
      %c0_21 = arith.constant 0 : index
      %c0_22 = arith.constant 0 : index
      %35 = vector.load %arg8[%c0_21, %c0_22] : memref<8x32xf32, #tpu.memory_space<vmem>>, vector<8x32xf32>
      tpu.vector_store %arg8[%c0_21, %c0_22], %34 {strides = array<i32>} : memref<8x32xf32, #tpu.memory_space<vmem>>, vector<8x32xf32>,
    } else {
    }
    %c0 = arith.constant 0 : index
    %c0_1 = arith.constant 0 : index
    %3 = vector.load %arg8[%c0, %c0_1] : memref<8x32xf32, #tpu.memory_space<vmem>>, vector<8x32xf32>
    %c0_2 = arith.constant 0 : index
    %c0_3 = arith.constant 0 : index
    %4 = vector.load %arg5[%c0_2, %c0_3] : memref<32x32xf32, #tpu.memory_space<vmem>>, vector<32x32xf32>
    %cst = arith.constant dense<0.000000e+00> : vector<8x32xf32>
    %5 = tpu.matmul %3, %4, %cst {dimension_numbers = #tpu.dot_dimension_numbers<[1], [0], [0], [1], [0, 0, 1, 1], [], []>} : vector<8x32xf32>, vector<32x32xf32>, vector<8x32xf32> -> vector<8x32xf32>
    %c0_4 = arith.constant 0 : index
    %c0_5 = arith.constant 0 : index
    %6 = vector.load %arg6[%c0_4, %c0_5] : memref<1x32xf32, #tpu.memory_space<vmem>>, vector<1x32xf32>
    %7 = vector.broadcast %6 : vector<1x32xf32> to vector<8x32xf32>
    %8 = arith.addf %5, %7 : vector<8x32xf32>
    %c0_6 = arith.constant 0 : index
    %c0_7 = arith.constant 0 : index
    %9 = vector.load %arg2[%c0_6, %c0_7] : memref<8x32xf32, #tpu.memory_space<vmem>>, vector<8x32xf32>
    %10 = arith.addf %9, %8 : vector<8x32xf32>
    %c0_8 = arith.constant 0 : index
    %c0_9 = arith.constant 0 : index
    %11 = vector.load %arg7[%c0_8, %c0_9] : memref<8x32xf32, #tpu.memory_space<vmem>>, vector<8x32xf32>
    tpu.vector_store %arg7[%c0_8, %c0_9], %10 {strides = array<i32>} : memref<8x32xf32, #tpu.memory_space<vmem>>, vector<8x32xf32>,
    return
  }
  func.func @transform_0(%arg0: i32, %arg1: i32) -> (i32, i32) {
    %c0_i32 = arith.constant 0 : i32
    %c0_i32_0 = arith.constant 0 : i32
    return %arg0, %c0_i32 : i32, i32
  }
  func.func @transform_1(%arg0: i32, %arg1: i32) -> (i32, i32) {
    %c0_i32 = arith.constant 0 : i32
    %c0_i32_0 = arith.constant 0 : i32
    %c0_i32_1 = arith.constant 0 : i32
    return %c0_i32, %c0_i32_0 : i32, i32
  }
  func.func @transform_2(%arg0: i32, %arg1: i32) -> (i32, i32) {
    %c0_i32 = arith.constant 0 : i32
    %c0_i32_0 = arith.constant 0 : i32
    %c0_i32_1 = arith.constant 0 : i32
    return %c0_i32, %c0_i32_0 : i32, i32
  }
  func.func @transform_3(%arg0: i32, %arg1: i32) -> (i32, i32) {
    %c0_i32 = arith.constant 0 : i32
    %c0_i32_0 = arith.constant 0 : i32
    return %c0_i32, %arg1 : i32, i32
  }
  func.func @transform_4(%arg0: i32, %arg1: i32) -> (i32, i32) {
    %c0_i32 = arith.constant 0 : i32
    %c0_i32_0 = arith.constant 0 : i32
    return %c0_i32, %arg1 : i32, i32
  }
  func.func @transform_5(%arg0: i32, %arg1: i32) -> (i32, i32) {
    %c0_i32 = arith.constant 0 : i32
    return %arg0, %arg1 : i32, i32
  }
}

</mosaic_0001>

<llo_original>
// kernel: tpu_custom_call.1
$region0: #{tpu_custom_call.1}
  #allocation0 [shape = 'u32[]', space=smem, size = 0x4, offset = 0x4, fixed_abs, tag = 'smem constant byte address 0x4 - core index']
  #allocation1 [shape = 'u32[144,128]{1,0:T(1,128)}', space=vmem, size = 0x12000, scoped, tag = 'internal scratch']
  #allocation2 [shape = 'f32[8,32]{1,0:T(8,128)}', space=vmem, size = 0x1000, scoped, tag = 'scratch operand']
  %s0 = inlined_call_operand.hbm [shape: f32[16,32], index: 0, kind: input, shape index: {}]
  %s1 = inlined_call_operand.vmem [shape: f32[1,32], index: 1, kind: input, shape index: {}]
  %s2 = inlined_call_operand.vmem [shape: f32[1,32], index: 2, kind: input, shape index: {}]
  %s3 = inlined_call_operand.hbm [shape: f32[32,32], index: 3, kind: input, shape index: {}]
  %s4 = inlined_call_operand.vmem [shape: f32[1,32], index: 4, kind: input, shape index: {}]
  %s5 = inlined_call_operand.hbm [shape: f32[16,32], index: 5, kind: output, shape index: {}]
  %s6 = sld [smem:[#allocation0]]
  $region65: #{tpu_custom_call.1} parent=0
    _
  %s8 = ssub.s32 1, %s6
  %s9 = scalar_select 0, %s8, %s6
  $region1: #{tpu_custom_call.1} parent=0
    #allocation3 [shape = 'u8[8192]{0}', space=vmem, size = 0x2000, scoped, tag = 'input window, operand 0']
    #allocation4 [shape = 's32[2]{0}', space=sflag, size = 0x8, scoped, tag = 'scoped memory for tpu_custom_call.1']
    #allocation5 [shape = 's32[2]{0}', space=sflag, size = 0x8, scoped, tag = 'scoped memory for tpu_custom_call.1']
    #allocation6 [shape = 'u8[16384]{0}', space=vmem, size = 0x4000, scoped, tag = 'input window, operand 3, single buffered']
    #allocation7 [shape = 's32[1]{0}', space=sflag, size = 0x4, scoped, tag = 'scoped memory for tpu_custom_call.1']
    #allocation8 [shape = 'u8[8192]{0}', space=vmem, size = 0x2000, scoped, tag = 'output window, operand 0']
    %10 = vsyncpa [#allocation4], 0
    %s11 = scalar_lea.sflag [#allocation4], 1
    %12 = vsyncpa %s11, 0
    %13 = vsyncpa [#allocation7], 0
    %14 = vsyncpa [#allocation5], 0
    %s15 = scalar_lea.sflag [#allocation5], 1
    %16 = vsyncpa %s15, 0
    loop: start=0, step=1, limit=4
    $region2: #{tpu_custom_call.1} parent=1 // loop_pre_header
      _
    $region3: #{tpu_custom_call.1} parent=1 // loop_header
      %s18 = sphi 0, %s22
      %p19 = scmp.ge.s32.totalorder %s18, 4
      %s25 = sphi 0, %s37
      %s26 = sphi 0, %s33
      %s27 = sphi 0, %s25
      %s28 = sphi 0, %s26
      %s29 = sphi 0, %s27
      %s30 = sphi 0, %s28
      %s40 = sphi 0, %s42
      %s43 = sphi 0, %s40
      %s44 = sphi 0, %s43
      %s60 = sphi 0, %s44
      %s64 = sphi 0, %s64
      %s66 = sphi 0, %s64
      %s67 = sphi 0, %s66
      %s81 = sphi 0, %s67
      %s85 = sphi 0, %s85
      %s87 = sphi 0, %s85
      %s88 = sphi 0, %s87
      %s102 = sphi 0, %s88
      %s108 = sphi 0, %s110
      %s111 = sphi 0, %s108
      %s112 = sphi 0, %s111
      %s128 = sphi 0, %s112
      %s134 = sphi 0, %s136
      %s137 = sphi 0, %s134
      %s138 = sphi 0, %s137
      %s154 = sphi 0, %s138
      %s162 = sphi 0, %s164
      %s165 = sphi 0, %s162
      %s166 = sphi 0, %s165
      %s182 = sphi 0, %s166
    $region4: #{tpu_custom_call.1} parent=1 // loop_header_branch
      %21 = sbr.rel (%p19) target = $region8
    $region5: #{tpu_custom_call.1} parent=1 // loop_body
      %s23 = ssub.s32 %s18, 1
      %s24 = ssub.s32 %s18, 2
      %s31 = sadd.s32 1, %s26
      %p32 = scmp.ge.s32.totalorder %s31, 1
      %s33 = scalar_select %p32, 0, %s31
      %s34 = sadd.s32 1, %s25
      %s35 = scalar_select %p32, %s34, %s25
      %p36 = scmp.ge.s32.totalorder %s35, 2
      %s37 = scalar_select %p36, 0, %s35
      %s38 = ssub.s32 %s25, %s37
      %p39 = scmp.eq.s32.totalorder %s38, 0
      %s41 = sadd.s32 %s40, 1
      %s42 = scalar_select %p39, %s40, %s41
      %p45 = pneg %p39
      %p46 = scmp.eq.s32.totalorder %s18, 1
      %p47 = por %p45, %p46
      %p48 = scmp.ne.s32.totalorder %s40, %s43
      %p49 = scmp.eq.s32.totalorder %s18, 0
      %p50 = por %p48, %p49
      %p51 = scmp.ne.s32.totalorder %s40, %s43
      %p52 = scmp.eq.s32.totalorder %s23, 1
      %p53 = por %p51, %p52
      %p54 = scmp.ne.s32.totalorder %s43, %s44
      %p55 = scmp.eq.s32.totalorder %s23, 0
      %p56 = por %p54, %p55
      %p57 = scmp.ne.s32.totalorder %s43, %s44
      %p58 = scmp.eq.s32.totalorder %s24, 1
      %p59 = por %p57, %p58
      %p61 = scmp.ne.s32.totalorder %s44, %s60
      %p62 = scmp.eq.s32.totalorder %s24, 0
      %p63 = por %p61, %p62
      %s65 = sadd.s32 %s64, 1
      %p68 = scmp.eq.s32.totalorder %s18, 1
      %p69 = scmp.ne.s32.totalorder %s64, %s66
      %p70 = scmp.eq.s32.totalorder %s18, 0
      %p71 = por %p69, %p70
      %p72 = scmp.ne.s32.totalorder %s64, %s66
      %p73 = scmp.eq.s32.totalorder %s23, 1
      %p74 = por %p72, %p73
      %p75 = scmp.ne.s32.totalorder %s66, %s67
      %p76 = scmp.eq.s32.totalorder %s23, 0
      %p77 = por %p75, %p76
      %p78 = scmp.ne.s32.totalorder %s66, %s67
      %p79 = scmp.eq.s32.totalorder %s24, 1
      %p80 = por %p78, %p79
      %p82 = scmp.ne.s32.totalorder %s67, %s81
      %p83 = scmp.eq.s32.totalorder %s24, 0
      %p84 = por %p82, %p83
      %s86 = sadd.s32 %s85, 1
      %p89 = scmp.eq.s32.totalorder %s18, 1
      %p90 = scmp.ne.s32.totalorder %s85, %s87
      %p91 = scmp.eq.s32.totalorder %s18, 0
      %p92 = por %p90, %p91
      %p93 = scmp.ne.s32.totalorder %s85, %s87
      %p94 = scmp.eq.s32.totalorder %s23, 1
      %p95 = por %p93, %p94
      %p96 = scmp.ne.s32.totalorder %s87, %s88
      %p97 = scmp.eq.s32.totalorder %s23, 0
      %p98 = por %p96, %p97
      %p99 = scmp.ne.s32.totalorder %s87, %s88
      %p100 = scmp.eq.s32.totalorder %s24, 1
      %p101 = por %p99, %p100
      %p103 = scmp.ne.s32.totalorder %s88, %s102
      %p104 = scmp.eq.s32.totalorder %s24, 0
      %p105 = por %p103, %p104
      %s106 = ssub.s32 %s26, %s33
      %p107 = scmp.eq.s32.totalorder %s106, 0
      %s109 = sadd.s32 %s108, 1
      %s110 = scalar_select %p107, %s108, %s109
      %p113 = pneg %p107
      %p114 = scmp.eq.s32.totalorder %s18, 1
      %p115 = por %p113, %p114
      %p116 = scmp.ne.s32.totalorder %s108, %s111
      %p117 = scmp.eq.s32.totalorder %s18, 0
      %p118 = por %p116, %p117
      %p119 = scmp.ne.s32.totalorder %s108, %s111
      %p120 = scmp.eq.s32.totalorder %s23, 1
      %p121 = por %p119, %p120
      %p122 = scmp.ne.s32.totalorder %s111, %s112
      %p123 = scmp.eq.s32.totalorder %s23, 0
      %p124 = por %p122, %p123
      %p125 = scmp.ne.s32.totalorder %s111, %s112
      %p126 = scmp.eq.s32.totalorder %s24, 1
      %p127 = por %p125, %p126
      %p129 = scmp.ne.s32.totalorder %s112, %s128
      %p130 = scmp.eq.s32.totalorder %s24, 0
      %p131 = por %p129, %p130
      %s132 = ssub.s32 %s26, %s33
      %p133 = scmp.eq.s32.totalorder %s132, 0
      %s135 = sadd.s32 %s134, 1
      %s136 = scalar_select %p133, %s134, %s135
      %p139 = pneg %p133
      %p140 = scmp.eq.s32.totalorder %s18, 1
      %p141 = por %p139, %p140
      %p142 = scmp.ne.s32.totalorder %s134, %s137
      %p143 = scmp.eq.s32.totalorder %s18, 0
      %p144 = por %p142, %p143
      %p145 = scmp.ne.s32.totalorder %s134, %s137
      %p146 = scmp.eq.s32.totalorder %s23, 1
      %p147 = por %p145, %p146
      %p148 = scmp.ne.s32.totalorder %s137, %s138
      %p149 = scmp.eq.s32.totalorder %s23, 0
      %p150 = por %p148, %p149
      %p151 = scmp.ne.s32.totalorder %s137, %s138
      %p152 = scmp.eq.s32.totalorder %s24, 1
      %p153 = por %p151, %p152
      %p155 = scmp.ne.s32.totalorder %s138, %s154
      %p156 = scmp.eq.s32.totalorder %s24, 0
      %p157 = por %p155, %p156
      %s158 = ssub.s32 %s25, %s37
      %s159 = ssub.s32 %s26, %s33
      %s160 = sor.u32 %s158, %s159
      %p161 = scmp.eq.s32.totalorder %s160, 0
      %s163 = sadd.s32 %s162, 1
      %s164 = scalar_select %p161, %s162, %s163
      %p167 = pneg %p161
      %p168 = scmp.eq.s32.totalorder %s18, 1
      %p169 = por %p167, %p168
      %p170 = scmp.ne.s32.totalorder %s162, %s165
      %p171 = scmp.eq.s32.totalorder %s18, 0
      %p172 = por %p170, %p171
      %p173 = scmp.ne.s32.totalorder %s162, %s165
      %p174 = scmp.eq.s32.totalorder %s23, 1
      %p175 = por %p173, %p174
      %p176 = scmp.ne.s32.totalorder %s165, %s166
      %p177 = scmp.eq.s32.totalorder %s23, 0
      %p178 = por %p176, %p177
      %p179 = scmp.ne.s32.totalorder %s165, %s166
      %p180 = scmp.eq.s32.totalorder %s24, 1
      %p181 = por %p179, %p180
      %p183 = scmp.ne.s32.totalorder %s166, %s182
      %p184 = scmp.eq.s32.totalorder %s24, 0
      %p185 = por %p183, %p184
      %p186 = scmp.le.s32.totalorder 1, %s18
      %p187 = scmp.lt.s32.totalorder %s18, 3
      %p188 = pnand %p186, %p187
      %p189 = pneg %p188
      // Predicated region
      $region9: #{tpu_custom_call.1} parent=5 // pred_check
        _
      $region10: #{tpu_custom_call.1} parent=5 // pred_check_branch
        %191 = sbr.rel (%p188) target = $region12
      $region11: #{tpu_custom_call.1} parent=5 // pred_region
        %s192 = ssub.s32 %s18, 1
        // Predicated region
        $region13: #{tpu_custom_call.1} parent=11 // pred_check
          %p193 = pneg %p77
        $region14: #{tpu_custom_call.1} parent=11 // pred_check_branch
          %195 = sbr.rel (%p193) target = $region16
        $region15: #{tpu_custom_call.1} parent=11 // pred_region
          _
        $region16: #{tpu_custom_call.1} parent=11 // pred_fallthru
          _
        // Predicated region
        $region17: #{tpu_custom_call.1} parent=11 // pred_check
          %p196 = pneg %p98
        $region18: #{tpu_custom_call.1} parent=11 // pred_check_branch
          %198 = sbr.rel (%p196) target = $region20
        $region19: #{tpu_custom_call.1} parent=11 // pred_region
          _
        $region20: #{tpu_custom_call.1} parent=11 // pred_fallthru
          _
        // Predicated region
        $region21: #{tpu_custom_call.1} parent=11 // pred_check
          %p199 = pneg %p124
        $region22: #{tpu_custom_call.1} parent=11 // pred_check_branch
          %201 = sbr.rel (%p199) target = $region24
        $region23: #{tpu_custom_call.1} parent=11 // pred_region
          %s203 = ssub.s32 512, 512
          %204 = vsyncadd [#allocation7], %s203
          %s205 = smul.addr %s28, 128
          %s206 = scalar_lea.hbm %s3, %s205
          %s207 = sshll.u32 [#allocation6], 4
          %s208 = int_to_ptr.vmem [resolvable:$true] %s207
          %213 = dma.hbm_to_vmem [thread:$0]  %s206, 512, %s208, [#allocation7], 128, 128, 8
        $region24: #{tpu_custom_call.1} parent=11 // pred_fallthru
          _
        // Predicated region
        $region25: #{tpu_custom_call.1} parent=11 // pred_check
          %p214 = pneg %p150
        $region26: #{tpu_custom_call.1} parent=11 // pred_check_branch
          %216 = sbr.rel (%p214) target = $region28
        $region27: #{tpu_custom_call.1} parent=11 // pred_region
          %p217 = scmp.lt.s32.totalorder %s28, 0
          %s218 = scalar_select %p217, %s28, 0
          %s219 = scalar_lea.vmem %s4, %s218
        $region28: #{tpu_custom_call.1} parent=11 // pred_fallthru
          _
      $region12: #{tpu_custom_call.1} parent=5 // pred_fallthru
        _
      %p220 = scmp.lt.s32.totalorder %s18, 2
      // Predicated region
      $region29: #{tpu_custom_call.1} parent=5 // pred_check
        %p221 = pneg %p220
      $region30: #{tpu_custom_call.1} parent=5 // pred_check_branch
        %223 = sbr.rel (%p221) target = $region32
      $region31: #{tpu_custom_call.1} parent=5 // pred_region
        // Predicated region
        $region33: #{tpu_custom_call.1} parent=31 // pred_check
          %p224 = pneg %p50
        $region34: #{tpu_custom_call.1} parent=31 // pred_check_branch
          %226 = sbr.rel (%p224) target = $region36
        $region35: #{tpu_custom_call.1} parent=31 // pred_region
          %s227 = sand.u32 %s40, 1
          %s228 = scalar_lea.sflag [#allocation4], %s227
          %s229 = sand.u32 %s40, 1
          %s230 = smul.addr %s229, 8
          %s231 = scalar_lea.vmem [#allocation3], %s230
          %s233 = ssub.s32 128, 128
          %234 = vsyncadd %s228, %s233
          %s235 = smul.addr %s25, 128
          %s236 = scalar_lea.hbm %s0, %s235
          %s238 = sshll.u32 %s231, 4
          %s239 = int_to_ptr.vmem [resolvable:$true] %s238
          %241 = dma.hbm_to_vmem [thread:$0]  %s236, 128, %s239, %s228
        $region36: #{tpu_custom_call.1} parent=31 // pred_fallthru
          _
      $region32: #{tpu_custom_call.1} parent=5 // pred_fallthru
        _
      %p242 = scmp.le.s32.totalorder 1, %s18
      %p243 = scmp.lt.s32.totalorder %s18, 3
      %p244 = pnand %p242, %p243
      %p245 = pneg %p244
      // Predicated region
      $region37: #{tpu_custom_call.1} parent=5 // pred_check
        _
      $region38: #{tpu_custom_call.1} parent=5 // pred_check_branch
        %247 = sbr.rel (%p244) target = $region40
      $region39: #{tpu_custom_call.1} parent=5 // pred_region
        %s248 = ssub.s32 %s18, 1
        %s249 = sand.u32 %s43, 1
        %s250 = scalar_lea.sflag [#allocation4], %s249
        %s251 = sand.u32 %s43, 1
        %s252 = smul.addr %s251, 8
        %s253 = scalar_lea.vmem [#allocation3], %s252
        // Predicated region
        $region41: #{tpu_custom_call.1} parent=39 // pred_check
          %p254 = pneg %p56
        $region42: #{tpu_custom_call.1} parent=39 // pred_check_branch
          %256 = sbr.rel (%p254) target = $region44
        $region43: #{tpu_custom_call.1} parent=39 // pred_region
          %257 = dma.done %s250, 128
        $region44: #{tpu_custom_call.1} parent=39 // pred_fallthru
          _
        // Predicated region
        $region45: #{tpu_custom_call.1} parent=39 // pred_check
          %p258 = pneg %p124
        $region46: #{tpu_custom_call.1} parent=39 // pred_check_branch
          %260 = sbr.rel (%p258) target = $region48
        $region47: #{tpu_custom_call.1} parent=39 // pred_region
          %261 = dma.done [#allocation7], 512
        $region48: #{tpu_custom_call.1} parent=39 // pred_fallthru
          _
        %s262 = sand.u32 %s43, 1
        %s263 = scalar_lea.sflag [#allocation4], %s262
        %s264 = sand.u32 %s43, 1
        %s265 = smul.addr %s264, 8
        %s266 = scalar_lea.vmem [#allocation3], %s265
        %p267 = pneg %p56
        %p268 = pneg %p53
        %p269 = pneg %p77
        %p270 = pneg %p74
        %p271 = pneg %p98
        %p272 = pneg %p95
        %p273 = pneg %p124
        %p274 = pneg %p121
        %p275 = scmp.lt.s32.totalorder %s28, 0
        %s276 = scalar_select %p275, %s28, 0
        %s277 = scalar_lea.vmem %s4, %s276
        %p278 = pneg %p150
        %p279 = pneg %p147
        %p280 = pneg %p178
        %p281 = pneg %p175
        %s282 = sand.u32 %s165, 1
        %s283 = scalar_lea.sflag [#allocation5], %s282
        %s284 = sand.u32 %s165, 1
        %s285 = smul.addr %s284, 8
        %s286 = scalar_lea.vmem [#allocation8], %s285
        %p287 = scmp.lt.s32.totalorder %s28, 0
        %s288 = scalar_select %p287, %s28, 0
        %s289 = scalar_lea.vmem %s4, %s288
        %p290 = scmp.eq.s32.totalorder %s28, 0
        // Predicated region
        $region49: #{tpu_custom_call.1} parent=39 // pred_check
          %p291 = pneg %p290
        $region50: #{tpu_custom_call.1} parent=39 // pred_check_branch
          %293 = sbr.rel (%p291) target = $region52
        $region51: #{tpu_custom_call.1} parent=39 // pred_region
          %v294 = vld [vmem:[%s253] sm:$0xff]
          %vm295 = vcmask 261120
          %v296 = vsel %vm295, %v294, 0.0
          %297 = vadd.xlane.f32.xlu0 %v296
          %v298 = vpop.xlane.xlu0 %297
          %v299 = vrcp.pop 32.0
          %v300 = vmul.f32 %v298, %v299
          %v301 = vsub.f32 %v294, %v300
          %v302 = vmul.f32 %v301, %v301
          %v303 = vsel %vm295, %v302, 0.0
          %304 = vadd.xlane.f32.xlu0 %v303
          %v305 = vpop.xlane.xlu0 %304
          %v306 = vmul.f32 %v305, %v299
          %v307 = vadd.f32 %v306, 1e-05
          %v308 = vrsqrt.pop %v307
          %v309 = vmul.f32 %v301, %v308
          %v310 = vld [vmem:[%s1] sm:$0x1]
          %v312 = vlaneseq
          %v313 = vshrl.u32 %v312, 7
          %v314 = vsub.s32 0, %v313
          %v315 = vrot.slane %v310, %v314
          %v317 = vmul.f32 %v309, %v315
          %v318 = vld [vmem:[%s2] sm:$0x1]
          %v320 = vlaneseq
          %v321 = vshrl.u32 %v320, 7
          %v322 = vsub.s32 0, %v321
          %v323 = vrot.slane %v318, %v322
          %v325 = vadd.f32 %v317, %v323
          %326 = vst.msk [vmem:[#allocation2] sm:$0xff] %vm295, %v325
        $region52: #{tpu_custom_call.1} parent=39 // pred_fallthru
          _
        %v327 = vld [vmem:[#allocation2] sm:$0xff]
        %v328 = vld [vmem:[#allocation6] sm:$0xff]
        %v329 = vld [vmem:[#allocation6 + $0x8] sm:$0xff]
        %v330 = vld [vmem:[#allocation6 + $0x10] sm:$0xff]
        %v331 = vld [vmem:[#allocation6 + $0x18] sm:$0xff]
        %v332 = vld [vmem:[%s289] sm:$0x1]
        %v334 = vlaneseq
        %v335 = vshrl.u32 %v334, 7
        %v336 = vsub.s32 0, %v335
        %v337 = vrot.slane %v332, %v336
        %vm339 = vcmask 261120
        %v341 = vsel %vm339, %v327, 0
        %343 = vmatprep.subr.mxu0 0.0
        %344 = vmatpush1.msra.mxu0 %v328
        %345 = vmatprep.subr.mxu0 0.0
        %346 = vmatpush1.msra.mxu0 %v329
        %347 = vmatprep.subr.mxu0 0.0
        %348 = vmatpush1.msra.mxu0 %v330
        %349 = vmatprep.subr.mxu0 0.0
        %350 = vmatpush1.msra.mxu0 %v331
        %351 = vmatprep.subr.mxu0 0.0
        %352 = vmatpush1.msra.mxu0 0.0
        %353 = vmatprep.subr.mxu0 0.0
        %354 = vmatpush1.msra.mxu0 0.0
        %355 = vmatprep.subr.mxu0 0.0
        %356 = vmatpush1.msra.mxu0 0.0
        %357 = vmatprep.subr.mxu0 0.0
        %358 = vmatpush1.msra.mxu0 0.0
        %359 = vmatprep.subr.mxu0 0.0
        %360 = vmatpush1.msra.mxu0 0.0
        %361 = vmatprep.subr.mxu0 0.0
        %362 = vmatpush1.msra.mxu0 0.0
        %363 = vmatprep.subr.mxu0 0.0
        %364 = vmatpush1.msra.mxu0 0.0
        %365 = vmatprep.subr.mxu0 0.0
        %366 = vmatpush1.msra.mxu0 0.0
        %367 = vmatprep.subr.mxu0 0.0
        %368 = vmatpush1.msra.mxu0 0.0
        %369 = vmatprep.subr.mxu0 0.0
        %370 = vmatpush1.msra.mxu0 0.0
        %371 = vmatprep.subr.mxu0 0.0
        %372 = vmatpush1.msra.mxu0 0.0
        %373 = vmatprep.subr.mxu0 0.0
        %374 = vmatpush1.msra.mxu0 0.0
        %375 = vmatprep.subr.mxu0 0.0
        %376 = vmatpush1.msra.mxu0 0.0
        %377 = vmatprep.subr.mxu0 0.0
        %378 = vmatpush1.msra.mxu0 0.0
        %379 = vmatprep.subr.mxu0 0.0
        %380 = vmatpush1.msra.mxu0 0.0
        %381 = vmatprep.subr.mxu0 0.0
        %382 = vmatpush1.msra.mxu0 0.0
        %383 = vmatprep.subr.mxu0 0.0
        %384 = vmatpush1.msra.mxu0 0.0
        %385 = vmatprep.subr.mxu0 0.0
        %386 = vmatpush1.msra.mxu0 0.0
        %387 = vmatprep.subr.mxu0 0.0
        %388 = vmatpush1.msra.mxu0 0.0
        %389 = vmatprep.subr.mxu0 0.0
        %390 = vmatpush1.msra.mxu0 0.0
        %391 = vmatprep.subr.mxu0 0.0
        %392 = vmatpush1.msra.mxu0 0.0
        %393 = vmatprep.subr.mxu0 0.0
        %394 = vmatpush1.msra.mxu0 0.0
        %395 = vmatprep.subr.mxu0 0.0
        %396 = vmatpush1.msra.mxu0 0.0
        %397 = vmatprep.subr.mxu0 0.0
        %398 = vmatpush1.msra.mxu0 0.0
        %399 = vmatprep.subr.mxu0 0.0
        %400 = vmatpush1.msra.mxu0 0.0
        %401 = vmatprep.subr.mxu0 0.0
        %402 = vmatpush1.msra.mxu0 0.0
        %403 = vmatprep.subr.mxu0 0.0
        %404 = vmatpush1.msra.mxu0 0.0
        %405 = vmatprep.subr.mxu0 0.0
        %406 = vmatpush1.msra.mxu0 0.0
        %407 = vmatprep.mubr.f32.mxu0 0.0
        %408 = vmatmul.mubr.f32.gmra.mrb[0].mxu0 %v341
        %v409 = vpop.f32.mrb[0].mxu0
        %v410 = vadd.f32 %v337, %v409
        %v411 = vpop.f32.mrb[0].mxu0
        %412 = vdwg.mxu0
        %v413 = vld [vmem:[%s253] sm:$0xff]
        %v414 = vadd.f32 %v413, %v410
        %415 = vst.msk [vmem:[%s286] sm:$0xff] %vm339, %v414
        %s416 = sand.u32 %s165, 1
        %s417 = scalar_lea.sflag [#allocation5], %s416
        %s418 = sand.u32 %s165, 1
        %s419 = smul.addr %s418, 8
        %s420 = scalar_lea.vmem [#allocation8], %s419
        // Predicated region
        $region53: #{tpu_custom_call.1} parent=39 // pred_check
          %p421 = pneg %p175
        $region54: #{tpu_custom_call.1} parent=39 // pred_check_branch
          %423 = sbr.rel (%p421) target = $region56
        $region55: #{tpu_custom_call.1} parent=39 // pred_region
          %s425 = ssub.s32 128, 128
          %426 = vsyncadd %s417, %s425
          %s427 = sadd.s32 %s28, %s27
          %s428 = smul.addr %s427, 128
          %s429 = scalar_lea.hbm %s5, %s428
          %s431 = sshll.u32 %s420, 4
          %s432 = int_to_ptr.vmem [resolvable:$true] %s431
          %434 = dma.vmem_to_hbm [thread:$0]  %s432, 128, %s429, %s417
        $region56: #{tpu_custom_call.1} parent=39 // pred_fallthru
          _
      $region40: #{tpu_custom_call.1} parent=5 // pred_fallthru
        _
      %p435 = scmp.le.s32.totalorder 2, %s18
      // Predicated region
      $region57: #{tpu_custom_call.1} parent=5 // pred_check
        %p436 = pneg %p435
      $region58: #{tpu_custom_call.1} parent=5 // pred_check_branch
        %438 = sbr.rel (%p436) target = $region60
      $region59: #{tpu_custom_call.1} parent=5 // pred_region
        %s439 = ssub.s32 %s18, 2
        // Predicated region
        $region61: #{tpu_custom_call.1} parent=59 // pred_check
          %p440 = pneg %p181
        $region62: #{tpu_custom_call.1} parent=59 // pred_check_branch
          %442 = sbr.rel (%p440) target = $region64
        $region63: #{tpu_custom_call.1} parent=59 // pred_region
          %s443 = sand.u32 %s166, 1
          %s444 = scalar_lea.sflag [#allocation5], %s443
          %s445 = sand.u32 %s166, 1
          %s446 = smul.addr %s445, 8
          %s447 = scalar_lea.vmem [#allocation8], %s446
          %448 = dma.done %s444, 128
        $region64: #{tpu_custom_call.1} parent=59 // pred_fallthru
          _
      $region60: #{tpu_custom_call.1} parent=5 // pred_fallthru
        _
    $region6: #{tpu_custom_call.1} parent=1 // loop_footer
      %s22 = sadd.s32 1, %s18
    $region7: #{tpu_custom_call.1} parent=1 // loop_footer_branch
      %17 = sbr.rel target = $region3
    $region8: #{tpu_custom_call.1} parent=1 // loop_exit
      _
    %449 = vsyncpa [#allocation4], 1
    %s450 = scalar_lea.sflag [#allocation4], 1
    %451 = vsyncpa %s450, 1
    %452 = vsyncpa [#allocation7], 1
    %453 = vsyncpa [#allocation5], 1
    %s454 = scalar_lea.sflag [#allocation5], 1
    %455 = vsyncpa %s454, 1

</llo_original>
